<compile_context>
chip_gen: v7x
topology: tpu7x:2x2x1
jax: 0.10.0
libtpu: 0.0.40
codegen_flags: <defaults>
</compile_context>

<pallas_src>
import functools

import jax
import jax.numpy as jnp
from jax.experimental import pallas as pl
from jax.experimental.pallas import tpu as pltpu


def _round_up(v, m):
    return (v + m - 1) // m * m


# ---------------------------------------------------------------------------
# Pallas kernel: fused pre-masked MLP forward for one batch tile
# ---------------------------------------------------------------------------
def _atwolayer_kernel(x_ref,
                      w1_ref, b1_ref,
                      w3_ref, b3_ref,
                      w4_ref, b4_ref,
                      o_ref, *, n_out):
    x = x_ref[...]                                                  # (TB, Dp) bf16

    # l1: (pre-masked) linear + ReLU, f32 accumulation on the MXU
    h = jnp.dot(x, w1_ref[...], preferred_element_type=jnp.float32) + b1_ref[...]
    h = jnp.maximum(h, 0.0)

    # l3: (pre-masked) linear + ReLU
    h = jnp.dot(h.astype(w3_ref.dtype), w3_ref[...],
                preferred_element_type=jnp.float32) + b3_ref[...]
    h = jnp.maximum(h, 0.0)

    # l4: (pre-masked) linear -> padded logits (TB, 128)
    z = jnp.dot(h.astype(w4_ref.dtype), w4_ref[...],
                preferred_element_type=jnp.float32) + b4_ref[...]

    # Force the pad lanes (>= n_out) to a huge negative so the row max / exp-sum
    # only see the real classes; exp underflows to exactly 0 for pad lanes.
    lane = jax.lax.broadcasted_iota(jnp.int32, z.shape, 1)
    z = jnp.where(lane < n_out, z, jnp.float32(-1e30))

    # Numerically stable LogSoftmax(dim=1)
    z = z - jnp.max(z, axis=-1, keepdims=True)
    o_ref[...] = z - jnp.log(jnp.sum(jnp.exp(z), axis=-1, keepdims=True))


# ---------------------------------------------------------------------------
# Wrapper
# ---------------------------------------------------------------------------
def atwolayer_forward(params, x, task):
    b = x.shape[0]
    x = x.reshape(b, -1).astype(jnp.float32)          # x.view(B, -1)
    d_in = x.shape[1]

    hid = params["l1"]["weight"].shape[1]
    n_out = params["l4"]["weight"].shape[1]

    d_in_p = _round_up(d_in, 8)      # sublane-align the contraction dim of l1
    hid_p = _round_up(hid, 128)      # lane-dense hidden width
    out_p = _round_up(n_out, 128)    # lane-dense output slab

    def layer(name, rows, cols):
        p = params[name]
        # Fold per-task mask into the weight ONCE (f32), zero-pad, cast to bf16.
        w = (p["weight"].astype(jnp.float32) * p["adjx"][task].astype(jnp.float32))
        w = jnp.pad(w, ((0, rows - w.shape[0]), (0, cols - w.shape[1])))
        bias = jnp.pad(p["bias"].astype(jnp.float32),
                       (0, cols - p["bias"].shape[0])).reshape(1, -1)
        return w.astype(jnp.bfloat16), bias

    w1, b1 = layer("l1", d_in_p, hid_p)
    w3, b3 = layer("l3", hid_p, hid_p)
    w4, b4 = layer("l4", hid_p, out_p)

    xp = jnp.pad(x, ((0, 0), (0, d_in_p - d_in))).astype(jnp.bfloat16)

    # Batch tiling: tiny B -> one block; large B -> >=2 balanced tiles
    # (v7x megacore), capped at 1024 rows.
    if b <= 16:
        tb = b
    else:
        n_tiles = max(2, pl.cdiv(b, 1024))
        tb = min(1024, _round_up(pl.cdiv(b, n_tiles), 8))
    grid = (pl.cdiv(b, tb),)

    row = lambda i: (i, 0)       # batch-tiled operands
    full = lambda i: (0, 0)      # resident weights / biases

    out_padded = pl.pallas_call(
        functools.partial(_atwolayer_kernel, n_out=n_out),
        out_shape=jax.ShapeDtypeStruct((b, out_p), jnp.float32),
        grid=grid,
        in_specs=[
            pl.BlockSpec((tb, d_in_p), row),
            pl.BlockSpec((d_in_p, hid_p), full),
            pl.BlockSpec((1, hid_p), full),
            pl.BlockSpec((hid_p, hid_p), full),
            pl.BlockSpec((1, hid_p), full),
            pl.BlockSpec((hid_p, out_p), full),
            pl.BlockSpec((1, out_p), full),
        ],
        out_specs=pl.BlockSpec((tb, out_p), row),
        compiler_params=pltpu.CompilerParams(
            dimension_semantics=("parallel",),
        ),
    )(xp, w1, b1, w3, b3, w4, b4)

    return out_padded[:, :n_out]


# ---------------------------------------------------------------------------
# Parameters (weights stored as (in, out); adjx as (tasks, in, out))
# ---------------------------------------------------------------------------
def make_params(key, input_size=28, hidden_size=100, output=10, tasks=8):
    sizes = {
        "l1": (input_size, hidden_size),
        "l2": (hidden_size, hidden_size),   # present in __init__, unused in forward
        "l3": (hidden_size, hidden_size),
        "l4": (hidden_size, output),
    }
    params = {}
    for name, (fan_in, fan_out) in sizes.items():
        key, kw, kb, ka = jax.random.split(key, 4)
        bound = 1.0 / (fan_in ** 0.5)
        params[name] = {
            "weight": jax.random.uniform(kw, (fan_in, fan_out), jnp.float32,
                                         -bound, bound),
            "bias": jax.random.uniform(kb, (fan_out,), jnp.float32,
                                       -bound, bound),
            "adjx": jax.random.uniform(ka, (tasks, fan_in, fan_out),
                                       jnp.float32, 0.0, 1.0),
        }
    return params


# Pure-JAX reference (f32) for correctness validation.
def reference_forward(params, x, task):
    b = x.shape[0]
    h = x.reshape(b, -1).astype(jnp.float32)
    for name in ("l1", "l3"):
        p = params[name]
        h = jnp.maximum(h @ (p["weight"] * p["adjx"][task]) + p["bias"], 0.0)
    p = params["l4"]
    z = h @ (p["weight"] * p["adjx"][task]) + p["bias"]
    return jax.nn.log_softmax(z, axis=1)


if __name__ == "__main__":
    B, INPUT, HIDDEN, OUTPUT, TASKS = 2, 28, 100, 10, 8
    key = jax.random.PRNGKey(0)
    pkey, xkey = jax.random.split(key)

    params = make_params(pkey, INPUT, HIDDEN, OUTPUT, TASKS)
    # (2, 4, 7) flattens to 28 features, matching input_size=28.
    x = jax.random.normal(xkey, (B, 4, 7), jnp.float32)
    task = 3

    fwd = jax.jit(atwolayer_forward, static_argnames=("task",))
    out = jax.block_until_ready(fwd(params, x, task=task))

    assert out.shape == (B, OUTPUT), out.shape
    assert bool(jnp.all(jnp.isfinite(out)))
    # log-softmax rows must exponentiate to probabilities summing to 1
    assert bool(jnp.allclose(jnp.sum(jnp.exp(out), axis=1), 1.0, atol=1e-3))
    # match the pure-JAX f32 reference (bf16 matmul operands -> loose tol)
    ref = reference_forward(params, x, task)
    assert bool(jnp.allclose(out, ref, atol=0.1, rtol=0.1)), (out, ref)
    print("KERNEL_OK")
</pallas_src>

<mosaic_0001>
module attributes {stable_mosaic.version = 11 : i64} {
  func.func @_atwolayer_kernel(%arg0: i32, %arg1: memref<2x32xbf16, #tpu.memory_space<vmem>>, %arg2: memref<32x128xbf16, #tpu.memory_space<vmem>>, %arg3: memref<1x128xf32, #tpu.memory_space<vmem>>, %arg4: memref<128x128xbf16, #tpu.memory_space<vmem>>, %arg5: memref<1x128xf32, #tpu.memory_space<vmem>>, %arg6: memref<128x128xbf16, #tpu.memory_space<vmem>>, %arg7: memref<1x128xf32, #tpu.memory_space<vmem>>, %arg8: memref<2x128xf32, #tpu.memory_space<vmem>>) attributes {dimension_semantics = [#tpu.dimension_semantics<parallel>], iteration_bounds = array<i64: 1>, scalar_prefetch = 0 : i64, scratch_operands = 0 : i64, tpu.core_type = #tpu.core_type<tc>, window_params = [{transform_indices = @transform_0, window_bounds = array<i64: 2, 32>}, {pipeline_mode = #tpu.pipeline_mode<synchronous>, transform_indices = @transform_1, window_bounds = array<i64: 32, 128>}, {pipeline_mode = #tpu.pipeline_mode<synchronous>, transform_indices = @transform_2, window_bounds = array<i64: 1, 128>}, {pipeline_mode = #tpu.pipeline_mode<synchronous>, transform_indices = @transform_3, window_bounds = array<i64: 128, 128>}, {pipeline_mode = #tpu.pipeline_mode<synchronous>, transform_indices = @transform_4, window_bounds = array<i64: 1, 128>}, {pipeline_mode = #tpu.pipeline_mode<synchronous>, transform_indices = @transform_5, window_bounds = array<i64: 128, 128>}, {pipeline_mode = #tpu.pipeline_mode<synchronous>, transform_indices = @transform_6, window_bounds = array<i64: 1, 128>}, {transform_indices = @transform_7, window_bounds = array<i64: 2, 128>}]} {
    %c0 = arith.constant 0 : index
    %c0_0 = arith.constant 0 : index
    %0 = vector.load %arg1[%c0, %c0_0] : memref<2x32xbf16, #tpu.memory_space<vmem>>, vector<2x32xbf16>
    %c0_1 = arith.constant 0 : index
    %c0_2 = arith.constant 0 : index
    %1 = vector.load %arg2[%c0_1, %c0_2] : memref<32x128xbf16, #tpu.memory_space<vmem>>, vector<32x128xbf16>
    %cst = arith.constant dense<0.000000e+00> : vector<2x128xf32>
    %2 = tpu.matmul %0, %1, %cst {dimension_numbers = #tpu.dot_dimension_numbers<[1], [0], [0], [1], [0, 0, 1, 1], [], []>} : vector<2x32xbf16>, vector<32x128xbf16>, vector<2x128xf32> -> vector<2x128xf32>
    %c0_3 = arith.constant 0 : index
    %c0_4 = arith.constant 0 : index
    %3 = vector.load %arg3[%c0_3, %c0_4] : memref<1x128xf32, #tpu.memory_space<vmem>>, vector<1x128xf32>
    %4 = vector.broadcast %3 : vector<1x128xf32> to vector<2x128xf32>
    %5 = arith.addf %2, %4 : vector<2x128xf32>
    %cst_5 = arith.constant 0.000000e+00 : f32
    %6 = vector.broadcast %cst_5 : f32 to vector<2x128xf32>
    %7 = arith.maximumf %5, %6 : vector<2x128xf32>
    %8 = arith.truncf %7 : vector<2x128xf32> to vector<2x128xbf16>
    %c0_6 = arith.constant 0 : index
    %c0_7 = arith.constant 0 : index
    %9 = vector.load %arg4[%c0_6, %c0_7] : memref<128x128xbf16, #tpu.memory_space<vmem>>, vector<128x128xbf16>
    %cst_8 = arith.constant dense<0.000000e+00> : vector<2x128xf32>
    %10 = tpu.matmul %8, %9, %cst_8 {dimension_numbers = #tpu.dot_dimension_numbers<[1], [0], [0], [1], [0, 0, 1, 1], [], []>} : vector<2x128xbf16>, vector<128x128xbf16>, vector<2x128xf32> -> vector<2x128xf32>
    %c0_9 = arith.constant 0 : index
    %c0_10 = arith.constant 0 : index
    %11 = vector.load %arg5[%c0_9, %c0_10] : memref<1x128xf32, #tpu.memory_space<vmem>>, vector<1x128xf32>
    %12 = vector.broadcast %11 : vector<1x128xf32> to vector<2x128xf32>
    %13 = arith.addf %10, %12 : vector<2x128xf32>
    %cst_11 = arith.constant 0.000000e+00 : f32
    %14 = vector.broadcast %cst_11 : f32 to vector<2x128xf32>
    %15 = arith.maximumf %13, %14 : vector<2x128xf32>
    %16 = arith.truncf %15 : vector<2x128xf32> to vector<2x128xbf16>
    %c0_12 = arith.constant 0 : index
    %c0_13 = arith.constant 0 : index
    %17 = vector.load %arg6[%c0_12, %c0_13] : memref<128x128xbf16, #tpu.memory_space<vmem>>, vector<128x128xbf16>
    %cst_14 = arith.constant dense<0.000000e+00> : vector<2x128xf32>
    %18 = tpu.matmul %16, %17, %cst_14 {dimension_numbers = #tpu.dot_dimension_numbers<[1], [0], [0], [1], [0, 0, 1, 1], [], []>} : vector<2x128xbf16>, vector<128x128xbf16>, vector<2x128xf32> -> vector<2x128xf32>
    %c0_15 = arith.constant 0 : index
    %c0_16 = arith.constant 0 : index
    %19 = vector.load %arg7[%c0_15, %c0_16] : memref<1x128xf32, #tpu.memory_space<vmem>>, vector<1x128xf32>
    %20 = vector.broadcast %19 : vector<1x128xf32> to vector<2x128xf32>
    %21 = arith.addf %18, %20 : vector<2x128xf32>
    %22 = tpu.iota {dimensions = array<i32: 1>} : vector<2x128xi32>
    %c10_i32 = arith.constant 10 : i32
    %23 = vector.broadcast %c10_i32 : i32 to vector<2x128xi32>
    %24 = arith.cmpi slt, %22, %23 : vector<2x128xi32>
    %cst_17 = arith.constant -1.000000e+30 : f32
    %25 = vector.broadcast %cst_17 : f32 to vector<2x128xf32>
    %26 = arith.select %24, %21, %25 : vector<2x128xi1>, vector<2x128xf32>
    %cst_18 = arith.constant dense<0xFF800000> : vector<2xf32>
    %27 = vector.multi_reduction <maximumf>, %26, %cst_18 [1] : vector<2x128xf32> to vector<2xf32>
    %28 = vector.shape_cast %27 : vector<2xf32> to vector<2x1xf32>
    %29 = vector.broadcast %28 : vector<2x1xf32> to vector<2x128xf32>
    %30 = arith.subf %26, %29 : vector<2x128xf32>
    %31 = math.exp %30 : vector<2x128xf32>
    %cst_19 = arith.constant dense<0.000000e+00> : vector<2xf32>
    %32 = vector.multi_reduction <add>, %31, %cst_19 [1] : vector<2x128xf32> to vector<2xf32>
    %33 = vector.shape_cast %32 : vector<2xf32> to vector<2x1xf32>
    %34 = math.log %33 : vector<2x1xf32>
    %35 = vector.broadcast %34 : vector<2x1xf32> to vector<2x128xf32>
    %36 = arith.subf %30, %35 : vector<2x128xf32>
    %c0_20 = arith.constant 0 : index
    %c0_21 = arith.constant 0 : index
    %37 = vector.load %arg8[%c0_20, %c0_21] : memref<2x128xf32, #tpu.memory_space<vmem>>, vector<2x128xf32>
    tpu.vector_store %arg8[%c0_20, %c0_21], %36 {strides = array<i32>} : memref<2x128xf32, #tpu.memory_space<vmem>>, vector<2x128xf32>,
    return
  }
  func.func @transform_0(%arg0: i32) -> (i32, i32) {
    %c0_i32 = arith.constant 0 : i32
    %c0_i32_0 = arith.constant 0 : i32
    return %arg0, %c0_i32 : i32, i32
  }
  func.func @transform_1(%arg0: i32) -> (i32, i32) {
    %c0_i32 = arith.constant 0 : i32
    %c0_i32_0 = arith.constant 0 : i32
    %c0_i32_1 = arith.constant 0 : i32
    return %c0_i32, %c0_i32_0 : i32, i32
  }
  func.func @transform_2(%arg0: i32) -> (i32, i32) {
    %c0_i32 = arith.constant 0 : i32
    %c0_i32_0 = arith.constant 0 : i32
    %c0_i32_1 = arith.constant 0 : i32
    return %c0_i32, %c0_i32_0 : i32, i32
  }
  func.func @transform_3(%arg0: i32) -> (i32, i32) {
    %c0_i32 = arith.constant 0 : i32
    %c0_i32_0 = arith.constant 0 : i32
    %c0_i32_1 = arith.constant 0 : i32
    return %c0_i32, %c0_i32_0 : i32, i32
  }
  func.func @transform_4(%arg0: i32) -> (i32, i32) {
    %c0_i32 = arith.constant 0 : i32
    %c0_i32_0 = arith.constant 0 : i32
    %c0_i32_1 = arith.constant 0 : i32
    return %c0_i32, %c0_i32_0 : i32, i32
  }
  func.func @transform_5(%arg0: i32) -> (i32, i32) {
    %c0_i32 = arith.constant 0 : i32
    %c0_i32_0 = arith.constant 0 : i32
    %c0_i32_1 = arith.constant 0 : i32
    return %c0_i32, %c0_i32_0 : i32, i32
  }
  func.func @transform_6(%arg0: i32) -> (i32, i32) {
    %c0_i32 = arith.constant 0 : i32
    %c0_i32_0 = arith.constant 0 : i32
    %c0_i32_1 = arith.constant 0 : i32
    return %c0_i32, %c0_i32_0 : i32, i32
  }
  func.func @transform_7(%arg0: i32) -> (i32, i32) {
    %c0_i32 = arith.constant 0 : i32
    %c0_i32_0 = arith.constant 0 : i32
    return %arg0, %c0_i32 : i32, i32
  }
}

</mosaic_0001>

<llo_original>
// kernel: atwolayer_forward.1
$region0: #{atwolayer_forward.1}
  #allocation0 [shape = 'u32[]', space=smem, size = 0x4, offset = 0x4, fixed_abs, tag = 'smem constant byte address 0x4 - core index']
  #allocation1 [shape = 'u32[144,128]{1,0:T(1,128)}', space=vmem, size = 0x12000, scoped, tag = 'internal scratch']
  %s0 = inlined_call_operand.vmem [shape: bf16[2,32], index: 0, kind: input, shape index: {}]
  %s1 = inlined_call_operand.vmem [shape: bf16[32,128], index: 1, kind: input, shape index: {}]
  %s2 = inlined_call_operand.vmem [shape: f32[1,128], index: 2, kind: input, shape index: {}]
  %s3 = inlined_call_operand.vmem [shape: bf16[128,128], index: 3, kind: input, shape index: {}]
  %s4 = inlined_call_operand.vmem [shape: f32[1,128], index: 4, kind: input, shape index: {}]
  %s5 = inlined_call_operand.vmem [shape: bf16[128,128], index: 5, kind: input, shape index: {}]
  %s6 = inlined_call_operand.vmem [shape: f32[1,128], index: 6, kind: input, shape index: {}]
  %s7 = inlined_call_operand.hbm [shape: f32[2,128], index: 7, kind: output, shape index: {}]
  %s8 = sld [smem:[#allocation0]]
  $region38: #{atwolayer_forward.1} parent=0
    _
  %s10 = ssub.s32 1, %s8
  %s11 = scalar_select 0, %s10, %s8
  $region1: #{atwolayer_forward.1} parent=0
    #allocation2 [shape = 'u8[1024]{0}', space=vmem, size = 0x400, scoped, tag = 'output window, operand 0, single buffered']
    #allocation3 [shape = 's32[1]{0}', space=sflag, size = 0x4, scoped, tag = 'scoped memory for atwolayer_forward.1']
    %12 = vsyncpa [#allocation3], 0
    // Predicated region
    $region2: #{atwolayer_forward.1} parent=1 // pred_check
      _
    $region3: #{atwolayer_forward.1} parent=1 // pred_check_branch
      %14 = sbr.rel (0) target = $region5
    $region4: #{atwolayer_forward.1} parent=1 // pred_region
      _
    $region5: #{atwolayer_forward.1} parent=1 // pred_fallthru
      _
    // Predicated region
    $region6: #{atwolayer_forward.1} parent=1 // pred_check
      _
    $region7: #{atwolayer_forward.1} parent=1 // pred_check_branch
      %16 = sbr.rel (0) target = $region9
    $region8: #{atwolayer_forward.1} parent=1 // pred_region
      _
    $region9: #{atwolayer_forward.1} parent=1 // pred_fallthru
      _
    // Predicated region
    $region10: #{atwolayer_forward.1} parent=1 // pred_check
      _
    $region11: #{atwolayer_forward.1} parent=1 // pred_check_branch
      %18 = sbr.rel (0) target = $region13
    $region12: #{atwolayer_forward.1} parent=1 // pred_region
      _
    $region13: #{atwolayer_forward.1} parent=1 // pred_fallthru
      _
    // Predicated region
    $region14: #{atwolayer_forward.1} parent=1 // pred_check
      _
    $region15: #{atwolayer_forward.1} parent=1 // pred_check_branch
      %20 = sbr.rel (0) target = $region17
    $region16: #{atwolayer_forward.1} parent=1 // pred_region
      _
    $region17: #{atwolayer_forward.1} parent=1 // pred_fallthru
      _
    // Predicated region
    $region18: #{atwolayer_forward.1} parent=1 // pred_check
      _
    $region19: #{atwolayer_forward.1} parent=1 // pred_check_branch
      %22 = sbr.rel (0) target = $region21
    $region20: #{atwolayer_forward.1} parent=1 // pred_region
      _
    $region21: #{atwolayer_forward.1} parent=1 // pred_fallthru
      _
    // Predicated region
    $region22: #{atwolayer_forward.1} parent=1 // pred_check
      _
    $region23: #{atwolayer_forward.1} parent=1 // pred_check_branch
      %24 = sbr.rel (0) target = $region25
    $region24: #{atwolayer_forward.1} parent=1 // pred_region
      _
    $region25: #{atwolayer_forward.1} parent=1 // pred_fallthru
      _
    // Predicated region
    $region26: #{atwolayer_forward.1} parent=1 // pred_check
      _
    $region27: #{atwolayer_forward.1} parent=1 // pred_check_branch
      %26 = sbr.rel (0) target = $region29
    $region28: #{atwolayer_forward.1} parent=1 // pred_region
      _
    $region29: #{atwolayer_forward.1} parent=1 // pred_fallthru
      _
    %v28 = vld [vmem:[%s0] sm:$0x1]
    %v29 = vld [vmem:[%s1] sm:$0xf]
    %v30 = vld [vmem:[%s1 + $0x4] sm:$0xf]
    %v31 = vld [vmem:[%s1 + $0x8] sm:$0xf]
    %v32 = vld [vmem:[%s1 + $0xc] sm:$0xf]
    %v33 = vld [vmem:[%s2] sm:$0x1]
    %v35 = vlaneseq
    %v36 = vshrl.u32 %v35, 7
    %v37 = vsub.s32 0, %v36
    %v38 = vrot.slane %v33, %v37
    %v44 = vunpack.c.l.b16 %v29
    %v45 = vunpack.c.l.b16 %v30
    %v46 = vunpack.c.l.b16 %v31
    %v47 = vunpack.c.l.b16 %v32
    %v48 = vpack.c.b16 %v45, %v44
    %v49 = vpack.c.b16 %v47, %v46
    %vm52 = vcmask 261120
    %v54 = vsel %vm52, %v28, 0
    %56 = vmatprep.subr.bf16.mxu0 0
    %57 = vmatpush1.bf16.msra.mxu0 %v48
    %58 = vmatprep.subr.bf16.mxu0 0
    %59 = vmatpush1.bf16.msra.mxu0 %v49
    %60 = vmatprep.subr.bf16.mxu0 0
    %61 = vmatpush1.bf16.msra.mxu0 0
    %62 = vmatprep.subr.bf16.mxu0 0
    %63 = vmatpush1.bf16.msra.mxu0 0
    %64 = vmatprep.subr.bf16.mxu0 0
    %65 = vmatpush1.bf16.msra.mxu0 0
    %66 = vmatprep.subr.bf16.mxu0 0
    %67 = vmatpush1.bf16.msra.mxu0 0
    %68 = vmatprep.subr.bf16.mxu0 0
    %69 = vmatpush1.bf16.msra.mxu0 0
    %70 = vmatprep.subr.bf16.mxu0 0
    %71 = vmatpush1.bf16.msra.mxu0 0
    %72 = vmatprep.subr.bf16.mxu0 0
    %73 = vmatpush1.bf16.msra.mxu0 0
    %74 = vmatprep.subr.bf16.mxu0 0
    %75 = vmatpush1.bf16.msra.mxu0 0
    %76 = vmatprep.subr.bf16.mxu0 0
    %77 = vmatpush1.bf16.msra.mxu0 0
    %78 = vmatprep.subr.bf16.mxu0 0
    %79 = vmatpush1.bf16.msra.mxu0 0
    %80 = vmatprep.subr.bf16.mxu0 0
    %81 = vmatpush1.bf16.msra.mxu0 0
    %82 = vmatprep.subr.bf16.mxu0 0
    %83 = vmatpush1.bf16.msra.mxu0 0
    %84 = vmatprep.subr.bf16.mxu0 0
    %85 = vmatpush1.bf16.msra.mxu0 0
    %86 = vmatprep.subr.bf16.mxu0 0
    %87 = vmatpush1.bf16.msra.mxu0 0
    %88 = vmatprep.mubr.bf16.mxu0 0
    %89 = vmatmul.mubr.bf16.gmra.mrb[0].mxu0 %v54
    %v90 = vpop.f32.mrb[0].mxu0
    %v91 = vadd.f32 %v38, %v90
    %v92 = vpop.f32.mrb[0].mxu0
    %v93 = vpop.f32.mrb[0].mxu0
    %v94 = vpop.f32.mrb[0].mxu0
    %95 = vdwg.mxu0
    %v96 = vmax.f32 %v91, 0.0
    %v97 = vpack.c.bf16 %v96, %v96
    %v98 = vld [vmem:[%s3] sm:$0xf]
    %v99 = vld [vmem:[%s3 + $0x4] sm:$0xf]
    %v100 = vld [vmem:[%s3 + $0x8] sm:$0xf]
    %v101 = vld [vmem:[%s3 + $0xc] sm:$0xf]
    %v102 = vld [vmem:[%s3 + $0x10] sm:$0xf]
    %v103 = vld [vmem:[%s3 + $0x14] sm:$0xf]
    %v104 = vld [vmem:[%s3 + $0x18] sm:$0xf]
    %v105 = vld [vmem:[%s3 + $0x1c] sm:$0xf]
    %v106 = vld [vmem:[%s3 + $0x20] sm:$0xf]
    %v107 = vld [vmem:[%s3 + $0x24] sm:$0xf]
    %v108 = vld [vmem:[%s3 + $0x28] sm:$0xf]
    %v109 = vld [vmem:[%s3 + $0x2c] sm:$0xf]
    %v110 = vld [vmem:[%s3 + $0x30] sm:$0xf]
    %v111 = vld [vmem:[%s3 + $0x34] sm:$0xf]
    %v112 = vld [vmem:[%s3 + $0x38] sm:$0xf]
    %v113 = vld [vmem:[%s3 + $0x3c] sm:$0xf]
    %v114 = vld [vmem:[%s4] sm:$0x1]
    %v116 = vlaneseq
    %v117 = vshrl.u32 %v116, 7
    %v118 = vsub.s32 0, %v117
    %v119 = vrot.slane %v114, %v118
    %v137 = vunpack.c.l.b16 %v98
    %v138 = vunpack.c.l.b16 %v99
    %v139 = vunpack.c.l.b16 %v100
    %v140 = vunpack.c.l.b16 %v101
    %v141 = vunpack.c.l.b16 %v102
    %v142 = vunpack.c.l.b16 %v103
    %v143 = vunpack.c.l.b16 %v104
    %v144 = vunpack.c.l.b16 %v105
    %v145 = vunpack.c.l.b16 %v106
    %v146 = vunpack.c.l.b16 %v107
    %v147 = vunpack.c.l.b16 %v108
    %v148 = vunpack.c.l.b16 %v109
    %v149 = vunpack.c.l.b16 %v110
    %v150 = vunpack.c.l.b16 %v111
    %v151 = vunpack.c.l.b16 %v112
    %v152 = vunpack.c.l.b16 %v113
    %v153 = vpack.c.b16 %v138, %v137
    %v154 = vpack.c.b16 %v140, %v139
    %v155 = vpack.c.b16 %v142, %v141
    %v156 = vpack.c.b16 %v144, %v143
    %v157 = vpack.c.b16 %v146, %v145
    %v158 = vpack.c.b16 %v148, %v147
    %v159 = vpack.c.b16 %v150, %v149
    %v160 = vpack.c.b16 %v152, %v151
    %169 = vmatprep.subr.bf16.mxu0 0
    %170 = vmatpush1.bf16.msra.mxu0 %v153
    %171 = vmatprep.subr.bf16.mxu0 0
    %172 = vmatpush1.bf16.msra.mxu0 %v154
    %173 = vmatprep.subr.bf16.mxu0 0
    %174 = vmatpush1.bf16.msra.mxu0 %v155
    %175 = vmatprep.subr.bf16.mxu0 0
    %176 = vmatpush1.bf16.msra.mxu0 %v156
    %177 = vmatprep.subr.bf16.mxu0 0
    %178 = vmatpush1.bf16.msra.mxu0 %v157
    %179 = vmatprep.subr.bf16.mxu0 0
    %180 = vmatpush1.bf16.msra.mxu0 %v158
    %181 = vmatprep.subr.bf16.mxu0 0
    %182 = vmatpush1.bf16.msra.mxu0 %v159
    %183 = vmatprep.subr.bf16.mxu0 0
    %184 = vmatpush1.bf16.msra.mxu0 %v160
    %185 = vmatprep.subr.bf16.mxu0 0
    %186 = vmatpush1.bf16.msra.mxu0 0
    %187 = vmatprep.subr.bf16.mxu0 0
    %188 = vmatpush1.bf16.msra.mxu0 0
    %189 = vmatprep.subr.bf16.mxu0 0
    %190 = vmatpush1.bf16.msra.mxu0 0
    %191 = vmatprep.subr.bf16.mxu0 0
    %192 = vmatpush1.bf16.msra.mxu0 0
    %193 = vmatprep.subr.bf16.mxu0 0
    %194 = vmatpush1.bf16.msra.mxu0 0
    %195 = vmatprep.subr.bf16.mxu0 0
    %196 = vmatpush1.bf16.msra.mxu0 0
    %197 = vmatprep.subr.bf16.mxu0 0
    %198 = vmatpush1.bf16.msra.mxu0 0
    %199 = vmatprep.subr.bf16.mxu0 0
    %200 = vmatpush1.bf16.msra.mxu0 0
    %201 = vmatprep.mubr.bf16.mxu0 0
    %202 = vmatmul.mubr.bf16.gmra.mrb[0].mxu0 %v97
    %v203 = vpop.f32.mrb[0].mxu0
    %v204 = vadd.f32 %v119, %v203
    %v205 = vpop.f32.mrb[0].mxu0
    %v206 = vpop.f32.mrb[0].mxu0
    %v207 = vpop.f32.mrb[0].mxu0
    %208 = vdwg.mxu0
    %v209 = vmax.f32 %v204, 0.0
    %v210 = vpack.c.bf16 %v209, %v209
    %v211 = vld [vmem:[%s5] sm:$0xf]
    %v212 = vld [vmem:[%s5 + $0x4] sm:$0xf]
    %v213 = vld [vmem:[%s5 + $0x8] sm:$0xf]
    %v214 = vld [vmem:[%s5 + $0xc] sm:$0xf]
    %v215 = vld [vmem:[%s5 + $0x10] sm:$0xf]
    %v216 = vld [vmem:[%s5 + $0x14] sm:$0xf]
    %v217 = vld [vmem:[%s5 + $0x18] sm:$0xf]
    %v218 = vld [vmem:[%s5 + $0x1c] sm:$0xf]
    %v219 = vld [vmem:[%s5 + $0x20] sm:$0xf]
    %v220 = vld [vmem:[%s5 + $0x24] sm:$0xf]
    %v221 = vld [vmem:[%s5 + $0x28] sm:$0xf]
    %v222 = vld [vmem:[%s5 + $0x2c] sm:$0xf]
    %v223 = vld [vmem:[%s5 + $0x30] sm:$0xf]
    %v224 = vld [vmem:[%s5 + $0x34] sm:$0xf]
    %v225 = vld [vmem:[%s5 + $0x38] sm:$0xf]
    %v226 = vld [vmem:[%s5 + $0x3c] sm:$0xf]
    %v227 = vld [vmem:[%s6] sm:$0x1]
    %v229 = vlaneseq
    %v230 = vshrl.u32 %v229, 7
    %v231 = vsub.s32 0, %v230
    %v232 = vrot.slane %v227, %v231
    %v250 = vunpack.c.l.b16 %v211
    %v251 = vunpack.c.l.b16 %v212
    %v252 = vunpack.c.l.b16 %v213
    %v253 = vunpack.c.l.b16 %v214
    %v254 = vunpack.c.l.b16 %v215
    %v255 = vunpack.c.l.b16 %v216
    %v256 = vunpack.c.l.b16 %v217
    %v257 = vunpack.c.l.b16 %v218
    %v258 = vunpack.c.l.b16 %v219
    %v259 = vunpack.c.l.b16 %v220
    %v260 = vunpack.c.l.b16 %v221
    %v261 = vunpack.c.l.b16 %v222
    %v262 = vunpack.c.l.b16 %v223
    %v263 = vunpack.c.l.b16 %v224
    %v264 = vunpack.c.l.b16 %v225
    %v265 = vunpack.c.l.b16 %v226
    %v266 = vpack.c.b16 %v251, %v250
    %v267 = vpack.c.b16 %v253, %v252
    %v268 = vpack.c.b16 %v255, %v254
    %v269 = vpack.c.b16 %v257, %v256
    %v270 = vpack.c.b16 %v259, %v258
    %v271 = vpack.c.b16 %v261, %v260
    %v272 = vpack.c.b16 %v263, %v262
    %v273 = vpack.c.b16 %v265, %v264
    %282 = vmatprep.subr.bf16.mxu0 0
    %283 = vmatpush1.bf16.msra.mxu0 %v266
    %284 = vmatprep.subr.bf16.mxu0 0
    %285 = vmatpush1.bf16.msra.mxu0 %v267
    %286 = vmatprep.subr.bf16.mxu0 0
    %287 = vmatpush1.bf16.msra.mxu0 %v268
    %288 = vmatprep.subr.bf16.mxu0 0
    %289 = vmatpush1.bf16.msra.mxu0 %v269
    %290 = vmatprep.subr.bf16.mxu0 0
    %291 = vmatpush1.bf16.msra.mxu0 %v270
    %292 = vmatprep.subr.bf16.mxu0 0
    %293 = vmatpush1.bf16.msra.mxu0 %v271
    %294 = vmatprep.subr.bf16.mxu0 0
    %295 = vmatpush1.bf16.msra.mxu0 %v272
    %296 = vmatprep.subr.bf16.mxu0 0
    %297 = vmatpush1.bf16.msra.mxu0 %v273
    %298 = vmatprep.subr.bf16.mxu0 0
    %299 = vmatpush1.bf16.msra.mxu0 0
    %300 = vmatprep.subr.bf16.mxu0 0
    %301 = vmatpush1.bf16.msra.mxu0 0
    %302 = vmatprep.subr.bf16.mxu0 0
    %303 = vmatpush1.bf16.msra.mxu0 0
    %304 = vmatprep.subr.bf16.mxu0 0
    %305 = vmatpush1.bf16.msra.mxu0 0
    %306 = vmatprep.subr.bf16.mxu0 0
    %307 = vmatpush1.bf16.msra.mxu0 0
    %308 = vmatprep.subr.bf16.mxu0 0
    %309 = vmatpush1.bf16.msra.mxu0 0
    %310 = vmatprep.subr.bf16.mxu0 0
    %311 = vmatpush1.bf16.msra.mxu0 0
    %312 = vmatprep.subr.bf16.mxu0 0
    %313 = vmatpush1.bf16.msra.mxu0 0
    %314 = vmatprep.mubr.bf16.mxu0 0
    %315 = vmatmul.mubr.bf16.gmra.mrb[0].mxu0 %v210
    %v316 = vpop.f32.mrb[0].mxu0
    %v317 = vadd.f32 %v232, %v316
    %v318 = vpop.f32.mrb[0].mxu0
    %v319 = vpop.f32.mrb[0].mxu0
    %v320 = vpop.f32.mrb[0].mxu0
    %321 = vdwg.mxu0
    %v322 = vlaneseq
    %v323 = vand.u32 %v322, 127
    %vm324 = vcmp.lt.s32.totalorder %v323, 10
    %v325 = vsel %vm324, %v317, -1e+30
    %vm326 = vcmask 1041408
    %v327 = vsel %vm326, %v325, -inf
    %328 = vmax.xlane.f32.xlu0 %v327
    %v329 = vpop.xlane.xlu0 %328
    %v330 = vsub.f32 %v325, %v329
    %v331 = vmul.f32 %v330, 1.442695
    %v332 = vpow.pop %v331
    %v333 = vsel %vm326, %v332, 0.0
    %334 = vadd.xlane.f32.xlu0 %v333
    %v335 = vpop.xlane.xlu0 %334
    %v336 = vlog2.pop %v335
    %v337 = vmul.f32 %v336, 0.6931472
    %v338 = vsub.f32 %v330, %v337
    %339 = vst [vmem:[#allocation2] sm:$0x3] %v338
    // Predicated region
    $region30: #{atwolayer_forward.1} parent=1 // pred_check
      _
    $region31: #{atwolayer_forward.1} parent=1 // pred_check_branch
      %341 = sbr.rel (0) target = $region33
    $region32: #{atwolayer_forward.1} parent=1 // pred_region
      %s343 = ssub.s32 32, 32
      %344 = vsyncadd [#allocation3], %s343
      %s346 = sshll.u32 [#allocation2], 4
      %s347 = int_to_ptr.vmem [resolvable:$true] %s346
      %349 = dma.vmem_to_hbm [thread:$0]  %s347, 32, %s7, [#allocation3]
    $region33: #{atwolayer_forward.1} parent=1 // pred_fallthru
      _
    // Predicated region
    $region34: #{atwolayer_forward.1} parent=1 // pred_check
      _
    $region35: #{atwolayer_forward.1} parent=1 // pred_check_branch
      %351 = sbr.rel (0) target = $region37
    $region36: #{atwolayer_forward.1} parent=1 // pred_region
      %352 = dma.done [#allocation3], 32
    $region37: #{atwolayer_forward.1} parent=1 // pred_fallthru
      _
    %353 = vsyncpa [#allocation3], 1

</llo_original>
